<compile_context>
chip_gen: v7x
topology: tpu7x:2x2x1
jax: 0.10.0
libtpu: 0.0.40
codegen_flags: <defaults>
</compile_context>

<pallas_src>
from functools import partial

import jax
import jax.numpy as jnp
from jax.experimental import pallas as pl
from jax.experimental.pallas import tpu as pltpu

# ImageNet normalization constants (torchvision ResNet50_Weights.IMAGENET1K_V2)
IMAGENET_MEAN = (0.485, 0.456, 0.406)
IMAGENET_STD = (0.229, 0.224, 0.225)


def _embed_kernel(patches_ref, w_ref, b_ref, out_ref, acc_ref):
    """One (image-block, patch-tile) step of the fused stem.

    patches_ref : [block_b, tile_np, K] bf16  im2col patches of block_b images
    w_ref       : [K, D] bf16  stem weight with ImageNet norm AND 1/Np folded in
    b_ref       : [1, D] f32   stem bias  with ImageNet norm AND 1/Np folded in
    out_ref     : [block_b, D] f32  embeddings (written on the last patch tile)
    acc_ref     : [block_b, D] f32  running per-image sum of ReLU activations
    """
    block_b, tile_np, K = patches_ref.shape
    D = out_ref.shape[-1]
    k = pl.program_id(1)

    @pl.when(k == 0)
    def _():
        acc_ref[...] = jnp.zeros_like(acc_ref)

    # Conv (stride-P PxP) as one MXU matmul over this tile's im2col rows.
    # tile_np % 8 == 0  =>  both reshapes below are sublane-aligned re-views.
    x = patches_ref[...].reshape(block_b * tile_np, K)                   # bf16
    h = jnp.dot(x, w_ref[...], preferred_element_type=jnp.float32)       # [M_tile, D] f32
    h = jnp.maximum(h + b_ref[...], 0.0)                                 # bias + ReLU (VPU)
    # Partial global average pool: 1/Np is folded into w/b, so just sum per image.
    acc_ref[...] += h.reshape(block_b, tile_np, D).sum(axis=1)           # XLU/VPU reduce

    @pl.when(k == pl.num_programs(1) - 1)
    def _():
        out_ref[...] = acc_ref[...].astype(out_ref.dtype)


@partial(jax.jit, static_argnames=("patch", "block_b", "tile_np"))
def image_embedder_forward(images_nchw, w, b, *, patch, block_b, tile_np):
    """Glue: layout transform + im2col + norm/pool folding in JAX, compute in Pallas.

    images_nchw : [B, 3, H, W] float32, RAW values in [0, 1] (ToTensor-scaled,
                  matching the PyTorch API; normalization is applied here).
    w           : [K, D] float32 stem weight (im2col form), K = patch*patch*3
    b           : [D]    float32 stem bias
    returns     : [B, D] embeddings (== flattened global-avgpool feature map)
    """
    B, C, H, W = images_nchw.shape
    assert C == 3 and H % patch == 0 and W % patch == 0
    D = w.shape[1]
    hp, wp = H // patch, W // patch
    npatch = hp * wp
    K = patch * patch * C
    assert B % block_b == 0, "batch must be divisible by the per-step image block"
    assert npatch % tile_np == 0, "patch count must be divisible by the patch tile"
    assert tile_np % 8 == 0, "patch tile must be sublane-aligned"

    # NCHW -> NHWC -> im2col [B, Np, K]  (K ordering: p_h, p_w, c with c fastest)
    x = jnp.transpose(images_nchw, (0, 2, 3, 1))                         # [B, H, W, C]
    x = x.reshape(B, hp, patch, wp, patch, C)
    x = jnp.transpose(x, (0, 1, 3, 2, 4, 5)).reshape(B, npatch, K)       # [B, Np, K]

    # Fold ImageNet normalization AND the 1/Np average-pool scale into the stem
    # weight/bias.  Both are exact: the norm is an affine fold through a linear
    # op; 1/Np > 0 commutes with ReLU (ReLU(y)/Np == ReLU(y/Np)).
    mean_k = jnp.tile(jnp.asarray(IMAGENET_MEAN, jnp.float32), patch * patch)      # [K]
    inv_std_k = 1.0 / jnp.tile(jnp.asarray(IMAGENET_STD, jnp.float32), patch * patch)
    pool_scale = 1.0 / float(npatch)
    w_fold = (inv_std_k[:, None] * w) * pool_scale                       # [K, D] f32
    b_fold = ((b - (mean_k * inv_std_k) @ w) * pool_scale).reshape(1, D) # [1, D] f32

    # bf16 MXU operands (f32 accumulation inside the kernel); halves HBM bytes.
    x_bf16 = x.astype(jnp.bfloat16)
    w_bf16 = w_fold.astype(jnp.bfloat16)

    grid = (B // block_b, npatch // tile_np)   # (parallel image blocks, patch tiles)

    grid_spec = pltpu.PrefetchScalarGridSpec(
        num_scalar_prefetch=0,
        grid=grid,
        in_specs=[
            # One strided tile of patches: block_b images x tile_np patches.
            pl.BlockSpec((block_b, tile_np, K), lambda i, k: (i, k, 0)),
            pl.BlockSpec((K, D), lambda i, k: (0, 0)),     # folded stem weight (invariant)
            pl.BlockSpec((1, D), lambda i, k: (0, 0)),     # folded stem bias   (invariant)
        ],
        # Same output block across the reduction axis -> resident accumulator target.
        out_specs=pl.BlockSpec((block_b, D), lambda i, k: (i, 0)),
        scratch_shapes=[pltpu.VMEM((block_b, D), jnp.float32)],
    )

    return pl.pallas_call(
        _embed_kernel,
        out_shape=jax.ShapeDtypeStruct((B, D), jnp.float32),
        grid_spec=grid_spec,
        compiler_params=pltpu.CompilerParams(
            dimension_semantics=("parallel", "arbitrary")),
    )(x_bf16, w_bf16, b_fold)


def _reference(images_nchw, w, b, patch):
    """Pure-JAX f32 reference (unfolded normalization / explicit mean pool)."""
    B, C, H, W = images_nchw.shape
    hp, wp = H // patch, W // patch
    x = jnp.transpose(images_nchw, (0, 2, 3, 1))
    x = x.reshape(B, hp, patch, wp, patch, C)
    x = jnp.transpose(x, (0, 1, 3, 2, 4, 5)).reshape(B, hp * wp, patch * patch * C)
    mean_k = jnp.tile(jnp.asarray(IMAGENET_MEAN, jnp.float32), patch * patch)
    std_k = jnp.tile(jnp.asarray(IMAGENET_STD, jnp.float32), patch * patch)
    x = (x - mean_k) / std_k
    h = jnp.maximum(jnp.einsum("bnk,kd->bnd", x, w) + b, 0.0)
    return jnp.mean(h, axis=1)                                           # [B, D]


if __name__ == "__main__":
    # Small shapes consistent with the module's forward contract:
    # images [B, 3, H, W] in [0, 1], output [B, output_dim].
    B, C, H, W = 16, 3, 32, 32
    PATCH = 4
    D = 256            # stands in for resnet50 output_dim = 2048
    BLOCK_B = 8        # images per grid step -> (8, 256) lane-dense output blocks
    TILE_NP = 16       # patches per reduction step -> 128 matmul rows / step
    K = PATCH * PATCH * C
    # grid = (16/8, 64/16) = (2, 4): 8 steps total, 4 per v7x TensorCore.

    key = jax.random.PRNGKey(0)
    k_img, k_w, k_b = jax.random.split(key, 3)
    images = jax.random.uniform(k_img, (B, C, H, W), jnp.float32)        # in [0, 1]
    w = jax.random.normal(k_w, (K, D), jnp.float32) * (1.0 / jnp.sqrt(K))
    b = jax.random.normal(k_b, (D,), jnp.float32) * 0.01

    emb = image_embedder_forward(images, w, b, patch=PATCH,
                                 block_b=BLOCK_B, tile_np=TILE_NP)
    emb = jax.block_until_ready(emb)

    ref = _reference(images, w, b, PATCH)
    assert emb.shape == (B, D)
    # bf16 MXU operands -> slightly looser tolerance than pure-f32.
    assert jnp.allclose(emb, ref, atol=3e-2, rtol=3e-2), "mismatch vs reference"
    print("KERNEL_OK")
</pallas_src>

<mosaic_0001>
module attributes {stable_mosaic.version = 11 : i64} {
  func.func @_embed_kernel(%arg0: i32, %arg1: i32, %arg2: memref<8x16x48xbf16, #tpu.memory_space<vmem>>, %arg3: memref<48x256xbf16, #tpu.memory_space<vmem>>, %arg4: memref<1x256xf32, #tpu.memory_space<vmem>>, %arg5: memref<8x256xf32, #tpu.memory_space<vmem>>, %arg6: memref<8x256xf32, #tpu.memory_space<vmem>>) attributes {dimension_semantics = [#tpu.dimension_semantics<parallel>, #tpu.dimension_semantics<arbitrary>], iteration_bounds = array<i64: 2, 4>, scalar_prefetch = 0 : i64, scratch_operands = 1 : i64, tpu.core_type = #tpu.core_type<tc>, window_params = [{transform_indices = @transform_0, window_bounds = array<i64: 8, 16, 48>}, {pipeline_mode = #tpu.pipeline_mode<synchronous>, transform_indices = @transform_1, window_bounds = array<i64: 48, 256>}, {pipeline_mode = #tpu.pipeline_mode<synchronous>, transform_indices = @transform_2, window_bounds = array<i64: 1, 256>}, {transform_indices = @transform_3, window_bounds = array<i64: 8, 256>}]} {
    %c0_i32 = arith.constant 0 : i32
    %0 = arith.cmpi eq, %arg1, %c0_i32 : i32
    %1 = arith.extui %0 : i1 to i32
    %c0_i32_0 = arith.constant 0 : i32
    %2 = arith.cmpi ne, %1, %c0_i32_0 : i32
    scf.if %2 {
      %cst_14 = arith.constant 0.000000e+00 : f32
      %20 = vector.broadcast %cst_14 : f32 to vector<8x256xf32>
      %c0_15 = arith.constant 0 : index
      %c0_16 = arith.constant 0 : index
      %21 = vector.load %arg6[%c0_15, %c0_16] : memref<8x256xf32, #tpu.memory_space<vmem>>, vector<8x256xf32>
      tpu.vector_store %arg6[%c0_15, %c0_16], %20 {strides = array<i32>} : memref<8x256xf32, #tpu.memory_space<vmem>>, vector<8x256xf32>,
    } else {
    }
    %c0 = arith.constant 0 : index
    %c0_1 = arith.constant 0 : index
    %c0_2 = arith.constant 0 : index
    %3 = vector.load %arg2[%c0, %c0_1, %c0_2] : memref<8x16x48xbf16, #tpu.memory_space<vmem>>, vector<8x16x48xbf16>
    %4 = vector.shape_cast %3 : vector<8x16x48xbf16> to vector<128x48xbf16>
    %c0_3 = arith.constant 0 : index
    %c0_4 = arith.constant 0 : index
    %5 = vector.load %arg3[%c0_3, %c0_4] : memref<48x256xbf16, #tpu.memory_space<vmem>>, vector<48x256xbf16>
    %cst = arith.constant dense<0.000000e+00> : vector<128x256xf32>
    %6 = tpu.matmul %4, %5, %cst {dimension_numbers = #tpu.dot_dimension_numbers<[1], [0], [0], [1], [0, 0, 1, 1], [], []>} : vector<128x48xbf16>, vector<48x256xbf16>, vector<128x256xf32> -> vector<128x256xf32>
    %c0_5 = arith.constant 0 : index
    %c0_6 = arith.constant 0 : index
    %7 = vector.load %arg4[%c0_5, %c0_6] : memref<1x256xf32, #tpu.memory_space<vmem>>, vector<1x256xf32>
    %8 = vector.broadcast %7 : vector<1x256xf32> to vector<128x256xf32>
    %9 = arith.addf %6, %8 : vector<128x256xf32>
    %cst_7 = arith.constant 0.000000e+00 : f32
    %10 = vector.broadcast %cst_7 : f32 to vector<128x256xf32>
    %11 = arith.maximumf %9, %10 : vector<128x256xf32>
    %c0_8 = arith.constant 0 : index
    %c0_9 = arith.constant 0 : index
    %12 = vector.load %arg6[%c0_8, %c0_9] : memref<8x256xf32, #tpu.memory_space<vmem>>, vector<8x256xf32>
    %13 = vector.shape_cast %11 : vector<128x256xf32> to vector<8x16x256xf32>
    %cst_10 = arith.constant dense<0.000000e+00> : vector<8x256xf32>
    %14 = vector.multi_reduction <add>, %13, %cst_10 [1] : vector<8x16x256xf32> to vector<8x256xf32>
    %15 = arith.addf %12, %14 : vector<8x256xf32>
    %c0_11 = arith.constant 0 : index
    %c0_12 = arith.constant 0 : index
    %16 = vector.load %arg6[%c0_11, %c0_12] : memref<8x256xf32, #tpu.memory_space<vmem>>, vector<8x256xf32>
    tpu.vector_store %arg6[%c0_11, %c0_12], %15 {strides = array<i32>} : memref<8x256xf32, #tpu.memory_space<vmem>>, vector<8x256xf32>,
    %c3_i32 = arith.constant 3 : i32
    %17 = arith.cmpi eq, %arg1, %c3_i32 : i32
    %18 = arith.extui %17 : i1 to i32
    %c0_i32_13 = arith.constant 0 : i32
    %19 = arith.cmpi ne, %18, %c0_i32_13 : i32
    scf.if %19 {
      %c0_14 = arith.constant 0 : index
      %c0_15 = arith.constant 0 : index
      %20 = vector.load %arg6[%c0_14, %c0_15] : memref<8x256xf32, #tpu.memory_space<vmem>>, vector<8x256xf32>
      %c0_16 = arith.constant 0 : index
      %c0_17 = arith.constant 0 : index
      %21 = vector.load %arg5[%c0_16, %c0_17] : memref<8x256xf32, #tpu.memory_space<vmem>>, vector<8x256xf32>
      tpu.vector_store %arg5[%c0_16, %c0_17], %20 {strides = array<i32>} : memref<8x256xf32, #tpu.memory_space<vmem>>, vector<8x256xf32>,
    } else {
    }
    return
  }
  func.func @transform_0(%arg0: i32, %arg1: i32) -> (i32, i32, i32) {
    %c0_i32 = arith.constant 0 : i32
    %c0_i32_0 = arith.constant 0 : i32
    return %arg0, %arg1, %c0_i32 : i32, i32, i32
  }
  func.func @transform_1(%arg0: i32, %arg1: i32) -> (i32, i32) {
    %c0_i32 = arith.constant 0 : i32
    %c0_i32_0 = arith.constant 0 : i32
    %c0_i32_1 = arith.constant 0 : i32
    return %c0_i32, %c0_i32_0 : i32, i32
  }
  func.func @transform_2(%arg0: i32, %arg1: i32) -> (i32, i32) {
    %c0_i32 = arith.constant 0 : i32
    %c0_i32_0 = arith.constant 0 : i32
    %c0_i32_1 = arith.constant 0 : i32
    return %c0_i32, %c0_i32_0 : i32, i32
  }
  func.func @transform_3(%arg0: i32, %arg1: i32) -> (i32, i32) {
    %c0_i32 = arith.constant 0 : i32
    %c0_i32_0 = arith.constant 0 : i32
    return %arg0, %c0_i32 : i32, i32
  }
}

</mosaic_0001>

<llo_original>
// kernel: tile.10
$region0: #{tile.10}
  #allocation0 [shape = 's32[1]{0}', space=sflag, size = 0x4, scoped, tag = 'scoped memory for tile.10']
  %s0 = inlined_call_operand.vmem [shape: f32[3], index: 0, kind: input, shape index: {}]
  %s1 = inlined_call_operand.vmem [shape: f32[16,3], index: 1, kind: output, shape index: {}]
  // Predicated region
  $region2: #{tile.10} parent=0 // pred_check
    _
  $region3: #{tile.10} parent=0 // pred_check_branch
    %3 = sbr.rel (0) target = $region5
  $region4: #{tile.10} parent=0 // pred_region
    _
  $region5: #{tile.10} parent=0 // pred_fallthru
    _
  %v4 = vld [vmem:[%s0] ss:$0 sm:$0xff]
  %5 = vst [vmem:[%s1] sm:$0xff] %v4
  %s6 = scalar_lea.vmem %s1, 8
  %7 = vst [vmem:[%s6] sm:$0xff] %v4

// kernel: tile.11
$region0: #{tile.11}
  %s0 = inlined_call_operand.vmem [shape: f32[16,3], index: 0, kind: input, shape index: {}]
  %s1 = inlined_call_operand.vmem [shape: f32[48], index: 1, kind: output, shape index: {}]
  $region1: #{tile.11} parent=0
    #allocation0 [shape = 'u8[4096]{0}', space=vmem, size = 0x1000, scoped, tag = 'scoped mem for output reshape']
    %v2 = vld [vmem:[%s0] sm:$0x1]
    %vm3 = vcmask 23552
    %4 = vst.msk [vmem:[#allocation0] sm:$0x1] %vm3, %v2
    %s5 = scalar_lea.vmem %s0, 15
    %v6 = vld [vmem:[%s5] sm:$0x1]
    %7 = vrot.lane.b32.xlu0 %v6, 45
    %v8 = vpop.permute.xlu0 %7
    %vm9 = vcmask 392552
    %10 = vst.msk [vmem:[#allocation0] sm:$0x1] %vm9, %v8
    %s11 = scalar_lea.vmem %s0, 14
    %v12 = vld [vmem:[%s11] sm:$0x1]
    %13 = vrot.lane.b32.xlu0 %v12, 42
    %v14 = vpop.permute.xlu0 %13
    %vm15 = vcmask 367952
    %16 = vst.msk [vmem:[#allocation0] sm:$0x1] %vm15, %v14
    %s17 = scalar_lea.vmem %s0, 13
    %v18 = vld [vmem:[%s17] sm:$0x1]
    %19 = vrot.lane.b32.xlu0 %v18, 39
    %v20 = vpop.permute.xlu0 %19
    %vm21 = vcmask 343352
    %22 = vst.msk [vmem:[#allocation0] sm:$0x1] %vm21, %v20
    %s23 = scalar_lea.vmem %s0, 12
    %v24 = vld [vmem:[%s23] sm:$0x1]
    %25 = vrot.lane.b32.xlu0 %v24, 36
    %v26 = vpop.permute.xlu0 %25
    %vm27 = vcmask 318752
    %28 = vst.msk [vmem:[#allocation0] sm:$0x1] %vm27, %v26
    %s29 = scalar_lea.vmem %s0, 11
    %v30 = vld [vmem:[%s29] sm:$0x1]
    %31 = vrot.lane.b32.xlu0 %v30, 33
    %v32 = vpop.permute.xlu0 %31
    %vm33 = vcmask 294152
    %34 = vst.msk [vmem:[#allocation0] sm:$0x1] %vm33, %v32
    %s35 = scalar_lea.vmem %s0, 10
    %v36 = vld [vmem:[%s35] sm:$0x1]
    %37 = vrot.lane.b32.xlu0 %v36, 30
    %v38 = vpop.permute.xlu0 %37
    %vm39 = vcmask 269552
    %40 = vst.msk [vmem:[#allocation0] sm:$0x1] %vm39, %v38
    %s41 = scalar_lea.vmem %s0, 9
    %v42 = vld [vmem:[%s41] sm:$0x1]
    %43 = vrot.lane.b32.xlu0 %v42, 27
    %v44 = vpop.permute.xlu0 %43
    %vm45 = vcmask 244952
    %46 = vst.msk [vmem:[#allocation0] sm:$0x1] %vm45, %v44
    %s47 = scalar_lea.vmem %s0, 8
    %v48 = vld [vmem:[%s47] sm:$0x1]
    %49 = vrot.lane.b32.xlu0 %v48, 24
    %v50 = vpop.permute.xlu0 %49
    %vm51 = vcmask 220352
    %52 = vst.msk [vmem:[#allocation0] sm:$0x1] %vm51, %v50
    %s53 = scalar_lea.vmem %s0, 7
    %v54 = vld [vmem:[%s53] sm:$0x1]
    %55 = vrot.lane.b32.xlu0 %v54, 21
    %v56 = vpop.permute.xlu0 %55
    %vm57 = vcmask 195752
    %58 = vst.msk [vmem:[#allocation0] sm:$0x1] %vm57, %v56
    %s59 = scalar_lea.vmem %s0, 6
    %v60 = vld [vmem:[%s59] sm:$0x1]
    %61 = vrot.lane.b32.xlu0 %v60, 18
    %v62 = vpop.permute.xlu0 %61
    %vm63 = vcmask 171152
    %64 = vst.msk [vmem:[#allocation0] sm:$0x1] %vm63, %v62
    %s65 = scalar_lea.vmem %s0, 5
    %v66 = vld [vmem:[%s65] sm:$0x1]
    %67 = vrot.lane.b32.xlu0 %v66, 15
    %v68 = vpop.permute.xlu0 %67
    %vm69 = vcmask 146552
    %70 = vst.msk [vmem:[#allocation0] sm:$0x1] %vm69, %v68
    %s71 = scalar_lea.vmem %s0, 4
    %v72 = vld [vmem:[%s71] sm:$0x1]
    %73 = vrot.lane.b32.xlu0 %v72, 12
    %v74 = vpop.permute.xlu0 %73
    %vm75 = vcmask 121952
    %76 = vst.msk [vmem:[#allocation0] sm:$0x1] %vm75, %v74
    %s77 = scalar_lea.vmem %s0, 3
    %v78 = vld [vmem:[%s77] sm:$0x1]
    %79 = vrot.lane.b32.xlu0 %v78, 9
    %v80 = vpop.permute.xlu0 %79
    %vm81 = vcmask 97352
    %82 = vst.msk [vmem:[#allocation0] sm:$0x1] %vm81, %v80
    %s83 = scalar_lea.vmem %s0, 2
    %v84 = vld [vmem:[%s83] sm:$0x1]
    %85 = vrot.lane.b32.xlu0 %v84, 6
    %v86 = vpop.permute.xlu0 %85
    %vm87 = vcmask 72752
    %88 = vst.msk [vmem:[#allocation0] sm:$0x1] %vm87, %v86
    %s89 = scalar_lea.vmem %s0, 1
    %v90 = vld [vmem:[%s89] sm:$0x1]
    %91 = vrot.lane.b32.xlu0 %v90, 3
    %v92 = vpop.permute.xlu0 %91
    %vm93 = vcmask 48152
    %94 = vst.msk [vmem:[#allocation0] sm:$0x1] %vm93, %v92
    %s96 = sshllo.u32 0, 1
    %v98 = vld [vmem:[#allocation0] sm:%s96]
    %s99 = sshllo.u32 0, 1
    %100 = vst [vmem:[%s1] sm:%s99] %v98

// kernel: mul.16
$region0: #{mul.16}
  #allocation0 [shape = 's32[1]{0}', space=sflag, size = 0x4, scoped, tag = 'scoped memory for mul.16']
  %s0 = inlined_call_operand.vmem [shape: f32[48], index: 0, kind: input, shape index: {}]
  %s1 = inlined_call_operand.vmem [shape: f32[48], index: 1, kind: input, shape index: {}]
  %s2 = inlined_call_operand.vmem [shape: f32[48], index: 2, kind: output, shape index: {}]
  %v3 = vld [vmem:[%s0] sm:$0x1]
  %v4 = vld [vmem:[%s1] sm:$0x1]
  %5 = xla_tuple %v3, %v4
  %6 = xla_tuple %5
  %v7 = vmul.f32 %v3, %v4
  %8 = xla_tuple %v7
  %9 = vst [vmem:[%s2] sm:$0x1] %v7

// kernel: image_embedder_forward.1
$region0: #{image_embedder_forward.1}
  #allocation0 [shape = 'u32[]', space=smem, size = 0x4, offset = 0x4, fixed_abs, tag = 'smem constant byte address 0x4 - core index']
  #allocation1 [shape = 'u32[144,128]{1,0:T(1,128)}', space=vmem, size = 0x12000, scoped, tag = 'internal scratch']
  #allocation2 [shape = 'f32[8,256]{1,0:T(8,128)}', space=vmem, size = 0x2000, scoped, tag = 'scratch operand']
  %s0 = inlined_call_operand.vmem [shape: bf16[16,64,48], index: 0, kind: input, shape index: {}]
  %s1 = inlined_call_operand.vmem [shape: bf16[48,256], index: 1, kind: input, shape index: {}]
  %s2 = inlined_call_operand.vmem [shape: f32[1,256], index: 2, kind: input, shape index: {}]
  %s3 = inlined_call_operand.hbm [shape: f32[16,256], index: 3, kind: output, shape index: {}]
  %s4 = sld [smem:[#allocation0]]
  $region94: #{image_embedder_forward.1} parent=0
    _
  %s6 = ssub.s32 1, %s4
  %s7 = scalar_select 0, %s6, %s4
  $region1: #{image_embedder_forward.1} parent=0
    #allocation3 [shape = 'u8[65536]{0}', space=vmem, size = 0x10000, scoped, tag = 'input window, operand 0']
    #allocation4 [shape = 'u8[16384]{0}', space=vmem, size = 0x4000, scoped, tag = 'output window, operand 0']
    #allocation5 [shape = 's32[2]{0}', space=sflag, size = 0x8, scoped, tag = 'scoped memory for image_embedder_forward.1']
    %8 = vsyncpa [#allocation5], 0
    %s9 = scalar_lea.sflag [#allocation5], 1
    %10 = vsyncpa %s9, 0
    loop: start=0, step=1, limit=10
    $region2: #{image_embedder_forward.1} parent=1 // loop_pre_header
      _
    $region3: #{image_embedder_forward.1} parent=1 // loop_header
      %s12 = sphi 0, %s16
      %p13 = scmp.ge.s32.totalorder %s12, 10
      %s19 = sphi 0, %s31
      %s20 = sphi 0, %s27
      %s21 = sphi 0, %s19
      %s22 = sphi 0, %s20
      %s23 = sphi 0, %s21
      %s24 = sphi 0, %s22
      %s36 = sphi 0, %s38
      %s39 = sphi 0, %s36
      %s40 = sphi 0, %s39
      %s56 = sphi 0, %s40
      %s60 = sphi 0, %s60
      %s62 = sphi 0, %s60
      %s63 = sphi 0, %s62
      %s77 = sphi 0, %s63
      %s81 = sphi 0, %s81
      %s83 = sphi 0, %s81
      %s84 = sphi 0, %s83
      %s98 = sphi 0, %s84
      %s104 = sphi 0, %s106
      %s107 = sphi 0, %s104
      %s108 = sphi 0, %s107
      %s124 = sphi 0, %s108
    $region4: #{image_embedder_forward.1} parent=1 // loop_header_branch
      %15 = sbr.rel (%p13) target = $region8
    $region5: #{image_embedder_forward.1} parent=1 // loop_body
      %s17 = ssub.s32 %s12, 1
      %s18 = ssub.s32 %s12, 2
      %s25 = sadd.s32 1, %s20
      %p26 = scmp.ge.s32.totalorder %s25, 4
      %s27 = scalar_select %p26, 0, %s25
      %s28 = sadd.s32 1, %s19
      %s29 = scalar_select %p26, %s28, %s19
      %p30 = scmp.ge.s32.totalorder %s29, 2
      %s31 = scalar_select %p30, 0, %s29
      %s32 = ssub.s32 %s19, %s31
      %s33 = ssub.s32 %s20, %s27
      %s34 = sor.u32 %s32, %s33
      %p35 = scmp.eq.s32.totalorder %s34, 0
      %s37 = sadd.s32 %s36, 1
      %s38 = scalar_select %p35, %s36, %s37
      %p41 = pneg %p35
      %p42 = scmp.eq.s32.totalorder %s12, 7
      %p43 = por %p41, %p42
      %p44 = scmp.ne.s32.totalorder %s36, %s39
      %p45 = scmp.eq.s32.totalorder %s12, 0
      %p46 = por %p44, %p45
      %p47 = scmp.ne.s32.totalorder %s36, %s39
      %p48 = scmp.eq.s32.totalorder %s17, 7
      %p49 = por %p47, %p48
      %p50 = scmp.ne.s32.totalorder %s39, %s40
      %p51 = scmp.eq.s32.totalorder %s17, 0
      %p52 = por %p50, %p51
      %p53 = scmp.ne.s32.totalorder %s39, %s40
      %p54 = scmp.eq.s32.totalorder %s18, 7
      %p55 = por %p53, %p54
      %p57 = scmp.ne.s32.totalorder %s40, %s56
      %p58 = scmp.eq.s32.totalorder %s18, 0
      %p59 = por %p57, %p58
      %s61 = sadd.s32 %s60, 1
      %p64 = scmp.eq.s32.totalorder %s12, 7
      %p65 = scmp.ne.s32.totalorder %s60, %s62
      %p66 = scmp.eq.s32.totalorder %s12, 0
      %p67 = por %p65, %p66
      %p68 = scmp.ne.s32.totalorder %s60, %s62
      %p69 = scmp.eq.s32.totalorder %s17, 7
      %p70 = por %p68, %p69
      %p71 = scmp.ne.s32.totalorder %s62, %s63
      %p72 = scmp.eq.s32.totalorder %s17, 0
      %p73 = por %p71, %p72
      %p74 = scmp.ne.s32.totalorder %s62, %s63
      %p75 = scmp.eq.s32.totalorder %s18, 7
      %p76 = por %p74, %p75
      %p78 = scmp.ne.s32.totalorder %s63, %s77
      %p79 = scmp.eq.s32.totalorder %s18, 0
      %p80 = por %p78, %p79
      %s82 = sadd.s32 %s81, 1
      %p85 = scmp.eq.s32.totalorder %s12, 7
      %p86 = scmp.ne.s32.totalorder %s81, %s83
      %p87 = scmp.eq.s32.totalorder %s12, 0
      %p88 = por %p86, %p87
      %p89 = scmp.ne.s32.totalorder %s81, %s83
      %p90 = scmp.eq.s32.totalorder %s17, 7
      %p91 = por %p89, %p90
      %p92 = scmp.ne.s32.totalorder %s83, %s84
      %p93 = scmp.eq.s32.totalorder %s17, 0
      %p94 = por %p92, %p93
      %p95 = scmp.ne.s32.totalorder %s83, %s84
      %p96 = scmp.eq.s32.totalorder %s18, 7
      %p97 = por %p95, %p96
      %p99 = scmp.ne.s32.totalorder %s84, %s98
      %p100 = scmp.eq.s32.totalorder %s18, 0
      %p101 = por %p99, %p100
      %s102 = ssub.s32 %s19, %s31
      %p103 = scmp.eq.s32.totalorder %s102, 0
      %s105 = sadd.s32 %s104, 1
      %s106 = scalar_select %p103, %s104, %s105
      %p109 = pneg %p103
      %p110 = scmp.eq.s32.totalorder %s12, 7
      %p111 = por %p109, %p110
      %p112 = scmp.ne.s32.totalorder %s104, %s107
      %p113 = scmp.eq.s32.totalorder %s12, 0
      %p114 = por %p112, %p113
      %p115 = scmp.ne.s32.totalorder %s104, %s107
      %p116 = scmp.eq.s32.totalorder %s17, 7
      %p117 = por %p115, %p116
      %p118 = scmp.ne.s32.totalorder %s107, %s108
      %p119 = scmp.eq.s32.totalorder %s17, 0
      %p120 = por %p118, %p119
      %p121 = scmp.ne.s32.totalorder %s107, %s108
      %p122 = scmp.eq.s32.totalorder %s18, 7
      %p123 = por %p121, %p122
      %p125 = scmp.ne.s32.totalorder %s108, %s124
      %p126 = scmp.eq.s32.totalorder %s18, 0
      %p127 = por %p125, %p126
      %p128 = scmp.le.s32.totalorder 1, %s12
      %p129 = scmp.lt.s32.totalorder %s12, 9
      %p130 = pnand %p128, %p129
      %p131 = pneg %p130
      // Predicated region
      $region9: #{image_embedder_forward.1} parent=5 // pred_check
        _
      $region10: #{image_embedder_forward.1} parent=5 // pred_check_branch
        %133 = sbr.rel (%p130) target = $region12
      $region11: #{image_embedder_forward.1} parent=5 // pred_region
        %s134 = ssub.s32 %s12, 1
        // Predicated region
        $region13: #{image_embedder_forward.1} parent=11 // pred_check
          %p135 = pneg %p73
        $region14: #{image_embedder_forward.1} parent=11 // pred_check_branch
          %137 = sbr.rel (%p135) target = $region16
        $region15: #{image_embedder_forward.1} parent=11 // pred_region
          _
        $region16: #{image_embedder_forward.1} parent=11 // pred_fallthru
          _
        // Predicated region
        $region17: #{image_embedder_forward.1} parent=11 // pred_check
          %p138 = pneg %p94
        $region18: #{image_embedder_forward.1} parent=11 // pred_check_branch
          %140 = sbr.rel (%p138) target = $region20
        $region19: #{image_embedder_forward.1} parent=11 // pred_region
          _
        $region20: #{image_embedder_forward.1} parent=11 // pred_fallthru
          _
      $region12: #{image_embedder_forward.1} parent=5 // pred_fallthru
        _
      %p141 = scmp.lt.s32.totalorder %s12, 8
      // Predicated region
      $region21: #{image_embedder_forward.1} parent=5 // pred_check
        %p142 = pneg %p141
      $region22: #{image_embedder_forward.1} parent=5 // pred_check_branch
        %144 = sbr.rel (%p142) target = $region24
      $region23: #{image_embedder_forward.1} parent=5 // pred_region
        // Predicated region
        $region25: #{image_embedder_forward.1} parent=23 // pred_check
          %p145 = pneg %p46
        $region26: #{image_embedder_forward.1} parent=23 // pred_check_branch
          %147 = sbr.rel (%p145) target = $region28
        $region27: #{image_embedder_forward.1} parent=23 // pred_region
          %s148 = sand.u32 %s36, 1
          %s149 = sand.u32 %s36, 1
          %s150 = smul.addr %s149, 64
          %s151 = scalar_lea.vmem [#allocation3], %s150
          %s152 = smul.u32 8, %s19
          %s153 = smul.u32 2, %s20
          %s154 = smul.addr %s152, 8
          %s155 = sadd.s32 %s153, %s154
          %s156 = smul.addr %s155, 4
          %s157 = scalar_lea.vmem %s0, %s156
          // Predicated region
          $region29: #{image_embedder_forward.1} parent=27 // pred_check
            _
          $region30: #{image_embedder_forward.1} parent=27 // pred_check_branch
            %159 = sbr.rel (0) target = $region32
          $region31: #{image_embedder_forward.1} parent=27 // pred_region
            // Predicated region
            $region33: #{image_embedder_forward.1} parent=31 // pred_check
              _
            $region34: #{image_embedder_forward.1} parent=31 // pred_check_branch
              %161 = sbr.rel target = $region36
            $region35: #{image_embedder_forward.1} parent=31 // pred_region
              // Predicated region
              $region48: #{image_embedder_forward.1} parent=35 // pred_check
                _
              $region49: #{image_embedder_forward.1} parent=35 // pred_check_branch
                %206 = sbr.rel (0) target = $region51
              $region50: #{image_embedder_forward.1} parent=35 // pred_region
                loop: start=0, step=1, limit=1
                $region52: #{image_embedder_forward.1} parent=50 // loop_pre_header
                  _
                $region53: #{image_embedder_forward.1} parent=50 // loop_header
                  %s208 = sphi 0, %s212
                  %p209 = scmp.ge.s32.totalorder %s208, 1
                  %s213 = sphi %s157, %s157
                  %s214 = sphi %s151, %s151
                $region54: #{image_embedder_forward.1} parent=50 // loop_header_branch
                  %211 = sbr.rel (%p209) target = $region58
                $region55: #{image_embedder_forward.1} parent=50 // loop_body
                  _
                $region56: #{image_embedder_forward.1} parent=50 // loop_footer
                  %s212 = sadd.s32 1, %s208
                $region57: #{image_embedder_forward.1} parent=50 // loop_footer_branch
                  %207 = sbr.rel target = $region53
                $region58: #{image_embedder_forward.1} parent=50 // loop_exit
                  _
                loop: start=0, step=1, limit=1
                $region59: #{image_embedder_forward.1} parent=50 // loop_pre_header
                  _
                $region60: #{image_embedder_forward.1} parent=50 // loop_header
                  %s217 = sphi 0, %s221
                  %p218 = scmp.ge.s32.totalorder %s217, 1
                  %s222 = sphi %s157, %s157
                  %s223 = sphi %s151, %s151
                $region61: #{image_embedder_forward.1} parent=50 // loop_header_branch
                  %220 = sbr.rel (%p218) target = $region65
                $region62: #{image_embedder_forward.1} parent=50 // loop_body
                  %v224 = vld [vmem:[%s222] sm:$0xf]
                  %225 = vst [vmem:[%s223] sm:$0xf] %v224
                  %v226 = vld [vmem:[%s222 + $0x4] sm:$0xf]
                  %227 = vst [vmem:[%s223 + $0x4] sm:$0xf] %v226
                  %v228 = vld [vmem:[%s222 + $0x20] sm:$0xf]
                  %229 = vst [vmem:[%s223 + $0x8] sm:$0xf] %v228
                  %v230 = vld [vmem:[%s222 + $0x24] sm:$0xf]
                  %231 = vst [vmem:[%s223 + $0xc] sm:$0xf] %v230
                  %v232 = vld [vmem:[%s222 + $0x40] sm:$0xf]
                  %233 = vst [vmem:[%s223 + $0x10] sm:$0xf] %v232
                  %v234 = vld [vmem:[%s222 + $0x44] sm:$0xf]
                  %235 = vst [vmem:[%s223 + $0x14] sm:$0xf] %v234
                  %v236 = vld [vmem:[%s222 + $0x60] sm:$0xf]
                  %237 = vst [vmem:[%s223 + $0x18] sm:$0xf] %v236
                  %v238 = vld [vmem:[%s222 + $0x64] sm:$0xf]
                  %239 = vst [vmem:[%s223 + $0x1c] sm:$0xf] %v238
                  %v240 = vld [vmem:[%s222 + $0x80] sm:$0xf]
                  %241 = vst [vmem:[%s223 + $0x20] sm:$0xf] %v240
                  %v242 = vld [vmem:[%s222 + $0x84] sm:$0xf]
                  %243 = vst [vmem:[%s223 + $0x24] sm:$0xf] %v242
                  %v244 = vld [vmem:[%s222 + $0xa0] sm:$0xf]
                  %245 = vst [vmem:[%s223 + $0x28] sm:$0xf] %v244
                  %v246 = vld [vmem:[%s222 + $0xa4] sm:$0xf]
                  %247 = vst [vmem:[%s223 + $0x2c] sm:$0xf] %v246
                  %v248 = vld [vmem:[%s222 + $0xc0] sm:$0xf]
                  %249 = vst [vmem:[%s223 + $0x30] sm:$0xf] %v248
                  %v250 = vld [vmem:[%s222 + $0xc4] sm:$0xf]
                  %251 = vst [vmem:[%s223 + $0x34] sm:$0xf] %v250
                  %v252 = vld [vmem:[%s222 + $0xe0] sm:$0xf]
                  %253 = vst [vmem:[%s223 + $0x38] sm:$0xf] %v252
                  %v254 = vld [vmem:[%s222 + $0xe4] sm:$0xf]
                  %255 = vst [vmem:[%s223 + $0x3c] sm:$0xf] %v254
                $region63: #{image_embedder_forward.1} parent=50 // loop_footer
                  %s221 = sadd.s32 1, %s217
                $region64: #{image_embedder_forward.1} parent=50 // loop_footer_branch
                  %216 = sbr.rel target = $region60
                $region65: #{image_embedder_forward.1} parent=50 // loop_exit
                  _
              $region51: #{image_embedder_forward.1} parent=35 // pred_fallthru
                _
            $region36: #{image_embedder_forward.1} parent=31 // pred_fallthru
              _
            // Predicated region
            $region37: #{image_embedder_forward.1} parent=31 // pred_check
              _
            $region38: #{image_embedder_forward.1} parent=31 // pred_check_branch
              %163 = sbr.rel (0) target = $region40
            $region39: #{image_embedder_forward.1} parent=31 // pred_region
              loop: start=0, step=1, limit=1
              $region41: #{image_embedder_forward.1} parent=39 // loop_pre_header
                _
              $region42: #{image_embedder_forward.1} parent=39 // loop_header
                %s166 = sphi 0, %s170
                %p167 = scmp.ge.s32.totalorder %s166, 1
                %s171 = sphi %s157, %s157
                %s172 = sphi %s151, %s151
              $region43: #{image_embedder_forward.1} parent=39 // loop_header_branch
                %169 = sbr.rel (%p167) target = $region47
              $region44: #{image_embedder_forward.1} parent=39 // loop_body
                %v173 = vld [vmem:[%s171] sm:$0xf]
                %174 = vst [vmem:[%s172] sm:$0xf] %v173
                %v175 = vld [vmem:[%s171 + $0x4] sm:$0xf]
                %176 = vst [vmem:[%s172 + $0x4] sm:$0xf] %v175
                %v177 = vld [vmem:[%s171 + $0x20] sm:$0xf]
                %178 = vst [vmem:[%s172 + $0x8] sm:$0xf] %v177
                %v179 = vld [vmem:[%s171 + $0x24] sm:$0xf]
                %180 = vst [vmem:[%s172 + $0xc] sm:$0xf] %v179
                %v181 = vld [vmem:[%s171 + $0x40] sm:$0xf]
                %182 = vst [vmem:[%s172 + $0x10] sm:$0xf] %v181
                %v183 = vld [vmem:[%s171 + $0x44] sm:$0xf]
                %184 = vst [vmem:[%s172 + $0x14] sm:$0xf] %v183
                %v185 = vld [vmem:[%s171 + $0x60] sm:$0xf]
                %186 = vst [vmem:[%s172 + $0x18] sm:$0xf] %v185
                %v187 = vld [vmem:[%s171 + $0x64] sm:$0xf]
                %188 = vst [vmem:[%s172 + $0x1c] sm:$0xf] %v187
                %v189 = vld [vmem:[%s171 + $0x80] sm:$0xf]
                %190 = vst [vmem:[%s172 + $0x20] sm:$0xf] %v189
                %v191 = vld [vmem:[%s171 + $0x84] sm:$0xf]
                %192 = vst [vmem:[%s172 + $0x24] sm:$0xf] %v191
                %v193 = vld [vmem:[%s171 + $0xa0] sm:$0xf]
                %194 = vst [vmem:[%s172 + $0x28] sm:$0xf] %v193
                %v195 = vld [vmem:[%s171 + $0xa4] sm:$0xf]
                %196 = vst [vmem:[%s172 + $0x2c] sm:$0xf] %v195
                %v197 = vld [vmem:[%s171 + $0xc0] sm:$0xf]
                %198 = vst [vmem:[%s172 + $0x30] sm:$0xf] %v197
                %v199 = vld [vmem:[%s171 + $0xc4] sm:$0xf]
                %200 = vst [vmem:[%s172 + $0x34] sm:$0xf] %v199
                %v201 = vld [vmem:[%s171 + $0xe0] sm:$0xf]
                %202 = vst [vmem:[%s172 + $0x38] sm:$0xf] %v201
                %v203 = vld [vmem:[%s171 + $0xe4] sm:$0xf]
                %204 = vst [vmem:[%s172 + $0x3c] sm:$0xf] %v203
              $region45: #{image_embedder_forward.1} parent=39 // loop_footer
                %s170 = sadd.s32 1, %s166
              $region46: #{image_embedder_forward.1} parent=39 // loop_footer_branch
                %165 = sbr.rel target = $region42
              $region47: #{image_embedder_forward.1} parent=39 // loop_exit
                _
            $region40: #{image_embedder_forward.1} parent=31 // pred_fallthru
              _
          $region32: #{image_embedder_forward.1} parent=27 // pred_fallthru
            _
          %256 = vnop
        $region28: #{image_embedder_forward.1} parent=23 // pred_fallthru
          _
      $region24: #{image_embedder_forward.1} parent=5 // pred_fallthru
        _
      %p257 = scmp.le.s32.totalorder 1, %s12
      %p258 = scmp.lt.s32.totalorder %s12, 9
      %p259 = pnand %p257, %p258
      %p260 = pneg %p259
      // Predicated region
      $region66: #{image_embedder_forward.1} parent=5 // pred_check
        _
      $region67: #{image_embedder_forward.1} parent=5 // pred_check_branch
        %262 = sbr.rel (%p259) target = $region69
      $region68: #{image_embedder_forward.1} parent=5 // pred_region
        %s263 = ssub.s32 %s12, 1
        %s264 = sand.u32 %s39, 1
        %s265 = sand.u32 %s39, 1
        %s266 = smul.addr %s265, 64
        %s267 = scalar_lea.vmem [#allocation3], %s266
        // Predicated region
        $region70: #{image_embedder_forward.1} parent=68 // pred_check
          %p268 = pneg %p52
        $region71: #{image_embedder_forward.1} parent=68 // pred_check_branch
          %270 = sbr.rel (%p268) target = $region73
        $region72: #{image_embedder_forward.1} parent=68 // pred_region
          _
        $region73: #{image_embedder_forward.1} parent=68 // pred_fallthru
          _
        %s271 = sand.u32 %s39, 1
        %s272 = sand.u32 %s39, 1
        %s273 = smul.addr %s272, 64
        %s274 = scalar_lea.vmem [#allocation3], %s273
        %p275 = pneg %p52
        %p276 = pneg %p49
        %p277 = pneg %p73
        %p278 = pneg %p70
        %p279 = pneg %p94
        %p280 = pneg %p91
        %p281 = pneg %p120
        %p282 = pneg %p117
        %s283 = sand.u32 %s107, 1
        %s284 = scalar_lea.sflag [#allocation5], %s283
        %s285 = sand.u32 %s107, 1
        %s286 = smul.addr %s285, 16
        %s287 = scalar_lea.vmem [#allocation4], %s286
        %s288 = smul.u32 8, %s21
        %s289 = smul.u32 2, %s22
        %p291 = scmp.eq.s32.totalorder %s22, 0
        // Predicated region
        $region74: #{image_embedder_forward.1} parent=68 // pred_check
          %p292 = pneg %p291
        $region75: #{image_embedder_forward.1} parent=68 // pred_check_branch
          %294 = sbr.rel (%p292) target = $region77
        $region76: #{image_embedder_forward.1} parent=68 // pred_region
          %295 = vst [vmem:[#allocation2] sm:$0xff] 0.0
          %296 = vst [vmem:[#allocation2 + $0x8] sm:$0xff] 0.0
        $region77: #{image_embedder_forward.1} parent=68 // pred_fallthru
          _
        %v297 = vld [vmem:[%s267] sm:$0xf]
        %v298 = vld [vmem:[%s267 + $0x4] sm:$0xf]
        %v299 = vld [vmem:[%s267 + $0x8] sm:$0xf]
        %v300 = vld [vmem:[%s267 + $0xc] sm:$0xf]
        %v301 = vld [vmem:[%s267 + $0x10] sm:$0xf]
        %v302 = vld [vmem:[%s267 + $0x14] sm:$0xf]
        %v303 = vld [vmem:[%s267 + $0x18] sm:$0xf]
        %v304 = vld [vmem:[%s267 + $0x1c] sm:$0xf]
        %v305 = vld [vmem:[%s267 + $0x20] sm:$0xf]
        %v306 = vld [vmem:[%s267 + $0x24] sm:$0xf]
        %v307 = vld [vmem:[%s267 + $0x28] sm:$0xf]
        %v308 = vld [vmem:[%s267 + $0x2c] sm:$0xf]
        %v309 = vld [vmem:[%s267 + $0x30] sm:$0xf]
        %v310 = vld [vmem:[%s267 + $0x34] sm:$0xf]
        %v311 = vld [vmem:[%s267 + $0x38] sm:$0xf]
        %v312 = vld [vmem:[%s267 + $0x3c] sm:$0xf]
        %v313 = vld [vmem:[%s1] sm:$0xff]
        %v314 = vld [vmem:[%s1 + $0x8] sm:$0xff]
        %v315 = vld [vmem:[%s1 + $0x10] sm:$0xff]
        %v316 = vld [vmem:[%s1 + $0x18] sm:$0xff]
        %v317 = vld [vmem:[%s1 + $0x20] sm:$0xff]
        %v318 = vld [vmem:[%s1 + $0x28] sm:$0xff]
        %v319 = vld [vmem:[%s2] sm:$0x3]
        %v321 = vlaneseq
        %v322 = vshrl.u32 %v321, 7
        %v323 = vsub.s32 0, %v322
        %v324 = vrot.slane %v319, %v323
        %v325 = vlaneseq
        %v326 = vshrl.u32 %v325, 7
        %v327 = vsub.s32 1, %v326
        %v328 = vrot.slane %v319, %v327
        %v347 = vunpack.c.l.b16 %v297
        %v348 = vunpack.c.l.b16 %v298
        %v349 = vunpack.c.l.b16 %v299
        %v350 = vunpack.c.l.b16 %v300
        %v351 = vunpack.c.l.b16 %v301
        %v352 = vunpack.c.l.b16 %v302
        %v353 = vunpack.c.l.b16 %v303
        %v354 = vunpack.c.l.b16 %v304
        %v355 = vunpack.c.l.b16 %v305
        %v356 = vunpack.c.l.b16 %v306
        %v357 = vunpack.c.l.b16 %v307
        %v358 = vunpack.c.l.b16 %v308
        %v359 = vunpack.c.l.b16 %v309
        %v360 = vunpack.c.l.b16 %v310
        %v361 = vunpack.c.l.b16 %v311
        %v362 = vunpack.c.l.b16 %v312
        %v363 = vpack.c.b16 %v348, %v347
        %v364 = vpack.c.b16 %v350, %v349
        %v365 = vpack.c.b16 %v352, %v351
        %v366 = vpack.c.b16 %v354, %v353
        %v367 = vpack.c.b16 %v356, %v355
        %v368 = vpack.c.b16 %v358, %v357
        %v369 = vpack.c.b16 %v360, %v359
        %v370 = vpack.c.b16 %v362, %v361
        %v377 = vunpack.c.l.b16 %v313
        %v378 = vunpack.c.h.b16 %v313
        %v379 = vunpack.c.l.b16 %v314
        %v380 = vunpack.c.h.b16 %v314
        %v381 = vunpack.c.l.b16 %v315
        %v382 = vunpack.c.h.b16 %v315
        %v383 = vunpack.c.l.b16 %v316
        %v384 = vunpack.c.h.b16 %v316
        %v385 = vunpack.c.l.b16 %v317
        %v386 = vunpack.c.h.b16 %v317
        %v387 = vunpack.c.l.b16 %v318
        %v388 = vunpack.c.h.b16 %v318
        %v389 = vpack.c.b16 %v379, %v377
        %v390 = vpack.c.b16 %v380, %v378
        %v391 = vpack.c.b16 %v383, %v381
        %v392 = vpack.c.b16 %v384, %v382
        %v393 = vpack.c.b16 %v387, %v385
        %v394 = vpack.c.b16 %v388, %v386
        %vm401 = vcmask 392192
        %v403 = vsel %vm401, %v363, 0
        %v406 = vsel %vm401, %v364, 0
        %v409 = vsel %vm401, %v365, 0
        %v412 = vsel %vm401, %v366, 0
        %v415 = vsel %vm401, %v367, 0
        %v418 = vsel %vm401, %v368, 0
        %v421 = vsel %vm401, %v369, 0
        %v424 = vsel %vm401, %v370, 0
        %426 = vmatprep.subr.bf16.mxu0 %v390
        %427 = vmatpush1.bf16.msra.mxu0 %v389
        %428 = vmatprep.subr.bf16.mxu0 %v392
        %429 = vmatpush1.bf16.msra.mxu0 %v391
        %430 = vmatprep.subr.bf16.mxu0 %v394
        %431 = vmatpush1.bf16.msra.mxu0 %v393
        %432 = vmatprep.subr.bf16.mxu0 0
        %433 = vmatpush1.bf16.msra.mxu0 0
        %434 = vmatprep.subr.bf16.mxu0 0
        %435 = vmatpush1.bf16.msra.mxu0 0
        %436 = vmatprep.subr.bf16.mxu0 0
        %437 = vmatpush1.bf16.msra.mxu0 0
        %438 = vmatprep.subr.bf16.mxu0 0
        %439 = vmatpush1.bf16.msra.mxu0 0
        %440 = vmatprep.subr.bf16.mxu0 0
        %441 = vmatpush1.bf16.msra.mxu0 0
        %442 = vmatprep.subr.bf16.mxu0 0
        %443 = vmatpush1.bf16.msra.mxu0 0
        %444 = vmatprep.subr.bf16.mxu0 0
        %445 = vmatpush1.bf16.msra.mxu0 0
        %446 = vmatprep.subr.bf16.mxu0 0
        %447 = vmatpush1.bf16.msra.mxu0 0
        %448 = vmatprep.subr.bf16.mxu0 0
        %449 = vmatpush1.bf16.msra.mxu0 0
        %450 = vmatprep.subr.bf16.mxu0 0
        %451 = vmatpush1.bf16.msra.mxu0 0
        %452 = vmatprep.subr.bf16.mxu0 0
        %453 = vmatpush1.bf16.msra.mxu0 0
        %454 = vmatprep.subr.bf16.mxu0 0
        %455 = vmatpush1.bf16.msra.mxu0 0
        %456 = vmatprep.subr.bf16.mxu0 0
        %457 = vmatpush1.bf16.msra.mxu0 0
        %458 = vmatprep.mubr.bf16.mxu0 0
        %459 = vmatmul.mubr.bf16.gmra.mrb[0].mxu0 %v403
        %v460 = vpop.f32.mrb[0].mxu0
        %v461 = vadd.f32 %v324, %v460
        %v462 = vpop.f32.mrb[0].mxu0
        %v463 = vadd.f32 %v328, %v462
        %v464 = vpop.f32.mrb[0].mxu0
        %v465 = vadd.f32 %v324, %v464
        %v466 = vpop.f32.mrb[0].mxu0
        %v467 = vadd.f32 %v328, %v466
        %468 = vmatprep.mubr.bf16.mxu0 0
        %469 = vmatmul.mubr.bf16.gmra.mrb[0].mxu0 %v406
        %v470 = vpop.f32.mrb[0].mxu0
        %v471 = vadd.f32 %v324, %v470
        %v472 = vpop.f32.mrb[0].mxu0
        %v473 = vadd.f32 %v328, %v472
        %v474 = vpop.f32.mrb[0].mxu0
        %v475 = vadd.f32 %v324, %v474
        %v476 = vpop.f32.mrb[0].mxu0
        %v477 = vadd.f32 %v328, %v476
        %478 = vmatprep.mubr.bf16.mxu0 0
        %479 = vmatmul.mubr.bf16.gmra.mrb[0].mxu0 %v409
        %v480 = vpop.f32.mrb[0].mxu0
        %v481 = vadd.f32 %v324, %v480
        %v482 = vpop.f32.mrb[0].mxu0
        %v483 = vadd.f32 %v328, %v482
        %v484 = vpop.f32.mrb[0].mxu0
        %v485 = vadd.f32 %v324, %v484
        %v486 = vpop.f32.mrb[0].mxu0
        %v487 = vadd.f32 %v328, %v486
        %488 = vmatprep.mubr.bf16.mxu0 0
        %489 = vmatmul.mubr.bf16.gmra.mrb[0].mxu0 %v412
        %v490 = vpop.f32.mrb[0].mxu0
        %v491 = vadd.f32 %v324, %v490
        %v492 = vpop.f32.mrb[0].mxu0
        %v493 = vadd.f32 %v328, %v492
        %v494 = vpop.f32.mrb[0].mxu0
        %v495 = vadd.f32 %v324, %v494
        %v496 = vpop.f32.mrb[0].mxu0
        %v497 = vadd.f32 %v328, %v496
        %498 = vmatprep.mubr.bf16.mxu0 0
        %499 = vmatmul.mubr.bf16.gmra.mrb[0].mxu0 %v415
        %v500 = vpop.f32.mrb[0].mxu0
        %v501 = vadd.f32 %v324, %v500
        %v502 = vpop.f32.mrb[0].mxu0
        %v503 = vadd.f32 %v328, %v502
        %v504 = vpop.f32.mrb[0].mxu0
        %v505 = vadd.f32 %v324, %v504
        %v506 = vpop.f32.mrb[0].mxu0
        %v507 = vadd.f32 %v328, %v506
        %508 = vmatprep.mubr.bf16.mxu0 0
        %509 = vmatmul.mubr.bf16.gmra.mrb[0].mxu0 %v418
        %v510 = vpop.f32.mrb[0].mxu0
        %v511 = vadd.f32 %v324, %v510
        %v512 = vpop.f32.mrb[0].mxu0
        %v513 = vadd.f32 %v328, %v512
        %v514 = vpop.f32.mrb[0].mxu0
        %v515 = vadd.f32 %v324, %v514
        %v516 = vpop.f32.mrb[0].mxu0
        %v517 = vadd.f32 %v328, %v516
        %518 = vmatprep.mubr.bf16.mxu0 0
        %519 = vmatmul.mubr.bf16.gmra.mrb[0].mxu0 %v421
        %v520 = vpop.f32.mrb[0].mxu0
        %v521 = vadd.f32 %v324, %v520
        %v522 = vpop.f32.mrb[0].mxu0
        %v523 = vadd.f32 %v328, %v522
        %v524 = vpop.f32.mrb[0].mxu0
        %v525 = vadd.f32 %v324, %v524
        %v526 = vpop.f32.mrb[0].mxu0
        %v527 = vadd.f32 %v328, %v526
        %528 = vmatprep.mubr.bf16.mxu0 0
        %529 = vmatmul.mubr.bf16.gmra.mrb[0].mxu0 %v424
        %v530 = vpop.f32.mrb[0].mxu0
        %v531 = vadd.f32 %v324, %v530
        %v532 = vpop.f32.mrb[0].mxu0
        %v533 = vadd.f32 %v328, %v532
        %v534 = vpop.f32.mrb[0].mxu0
        %v535 = vadd.f32 %v324, %v534
        %v536 = vpop.f32.mrb[0].mxu0
        %v537 = vadd.f32 %v328, %v536
        %538 = vdwg.mxu0
        %v539 = vmax.f32 %v461, 0.0
        %v540 = vmax.f32 %v463, 0.0
        %v541 = vmax.f32 %v465, 0.0
        %v542 = vmax.f32 %v467, 0.0
        %v543 = vmax.f32 %v471, 0.0
        %v544 = vmax.f32 %v473, 0.0
        %v545 = vmax.f32 %v475, 0.0
        %v546 = vmax.f32 %v477, 0.0
        %v547 = vmax.f32 %v481, 0.0
        %v548 = vmax.f32 %v483, 0.0
        %v549 = vmax.f32 %v485, 0.0
        %v550 = vmax.f32 %v487, 0.0
        %v551 = vmax.f32 %v491, 0.0
        %v552 = vmax.f32 %v493, 0.0
        %v553 = vmax.f32 %v495, 0.0
        %v554 = vmax.f32 %v497, 0.0
        %v555 = vmax.f32 %v501, 0.0
        %v556 = vmax.f32 %v503, 0.0
        %v557 = vmax.f32 %v505, 0.0
        %v558 = vmax.f32 %v507, 0.0
        %v559 = vmax.f32 %v511, 0.0
        %v560 = vmax.f32 %v513, 0.0
        %v561 = vmax.f32 %v515, 0.0
        %v562 = vmax.f32 %v517, 0.0
        %v563 = vmax.f32 %v521, 0.0
        %v564 = vmax.f32 %v523, 0.0
        %v565 = vmax.f32 %v525, 0.0
        %v566 = vmax.f32 %v527, 0.0
        %v567 = vmax.f32 %v531, 0.0
        %v568 = vmax.f32 %v533, 0.0
        %v569 = vmax.f32 %v535, 0.0
        %v570 = vmax.f32 %v537, 0.0
        %v571 = vld [vmem:[#allocation2] sm:$0xff]
        %v572 = vld [vmem:[#allocation2 + $0x8] sm:$0xff]
        %v573 = vadd.f32 %v539, %v541
        %v574 = vrot.slane %v573, 4
        %v575 = vadd.f32 %v573, %v574
        %v576 = vrot.slane %v575, 2
        %v577 = vadd.f32 %v575, %v576
        %v578 = vrot.slane %v577, 1
        %v579 = vadd.f32 %v577, %v578
        %v580 = vadd.f32 %v540, %v542
        %v581 = vrot.slane %v580, 4
        %v582 = vadd.f32 %v580, %v581
        %v583 = vrot.slane %v582, 2
        %v584 = vadd.f32 %v582, %v583
        %v585 = vrot.slane %v584, 1
        %v586 = vadd.f32 %v584, %v585
        %v587 = vadd.f32 %v543, %v545
        %v588 = vrot.slane %v587, 4
        %v589 = vadd.f32 %v587, %v588
        %v590 = vrot.slane %v589, 2
        %v591 = vadd.f32 %v589, %v590
        %v592 = vrot.slane %v591, 1
        %v593 = vadd.f32 %v591, %v592
        %v594 = vadd.f32 %v544, %v546
        %v595 = vrot.slane %v594, 4
        %v596 = vadd.f32 %v594, %v595
        %v597 = vrot.slane %v596, 2
        %v598 = vadd.f32 %v596, %v597
        %v599 = vrot.slane %v598, 1
        %v600 = vadd.f32 %v598, %v599
        %v601 = vadd.f32 %v547, %v549
        %v602 = vrot.slane %v601, 4
        %v603 = vadd.f32 %v601, %v602
        %v604 = vrot.slane %v603, 2
        %v605 = vadd.f32 %v603, %v604
        %v606 = vrot.slane %v605, 1
        %v607 = vadd.f32 %v605, %v606
        %v608 = vadd.f32 %v548, %v550
        %v609 = vrot.slane %v608, 4
        %v610 = vadd.f32 %v608, %v609
        %v611 = vrot.slane %v610, 2
        %v612 = vadd.f32 %v610, %v611
        %v613 = vrot.slane %v612, 1
        %v614 = vadd.f32 %v612, %v613
        %v615 = vadd.f32 %v551, %v553
        %v616 = vrot.slane %v615, 4
        %v617 = vadd.f32 %v615, %v616
        %v618 = vrot.slane %v617, 2
        %v619 = vadd.f32 %v617, %v618
        %v620 = vrot.slane %v619, 1
        %v621 = vadd.f32 %v619, %v620
        %v622 = vadd.f32 %v552, %v554
        %v623 = vrot.slane %v622, 4
        %v624 = vadd.f32 %v622, %v623
        %v625 = vrot.slane %v624, 2
        %v626 = vadd.f32 %v624, %v625
        %v627 = vrot.slane %v626, 1
        %v628 = vadd.f32 %v626, %v627
        %v629 = vadd.f32 %v555, %v557
        %v630 = vrot.slane %v629, 4
        %v631 = vadd.f32 %v629, %v630
        %v632 = vrot.slane %v631, 2
        %v633 = vadd.f32 %v631, %v632
        %v634 = vrot.slane %v633, 1
        %v635 = vadd.f32 %v633, %v634
        %v636 = vadd.f32 %v556, %v558
        %v637 = vrot.slane %v636, 4
        %v638 = vadd.f32 %v636, %v637
        %v639 = vrot.slane %v638, 2
        %v640 = vadd.f32 %v638, %v639
        %v641 = vrot.slane %v640, 1
        %v642 = vadd.f32 %v640, %v641
        %v643 = vadd.f32 %v559, %v561
        %v644 = vrot.slane %v643, 4
        %v645 = vadd.f32 %v643, %v644
        %v646 = vrot.slane %v645, 2
        %v647 = vadd.f32 %v645, %v646
        %v648 = vrot.slane %v647, 1
        %v649 = vadd.f32 %v647, %v648
        %v650 = vadd.f32 %v560, %v562
        %v651 = vrot.slane %v650, 4
        %v652 = vadd.f32 %v650, %v651
        %v653 = vrot.slane %v652, 2
        %v654 = vadd.f32 %v652, %v653
        %v655 = vrot.slane %v654, 1
        %v656 = vadd.f32 %v654, %v655
        %v657 = vadd.f32 %v563, %v565
        %v658 = vrot.slane %v657, 4
        %v659 = vadd.f32 %v657, %v658
        %v660 = vrot.slane %v659, 2
        %v661 = vadd.f32 %v659, %v660
        %v662 = vrot.slane %v661, 1
        %v663 = vadd.f32 %v661, %v662
        %v664 = vadd.f32 %v564, %v566
        %v665 = vrot.slane %v664, 4
        %v666 = vadd.f32 %v664, %v665
        %v667 = vrot.slane %v666, 2
        %v668 = vadd.f32 %v666, %v667
        %v669 = vrot.slane %v668, 1
        %v670 = vadd.f32 %v668, %v669
        %v671 = vadd.f32 %v567, %v569
        %v672 = vrot.slane %v671, 4
        %v673 = vadd.f32 %v671, %v672
        %v674 = vrot.slane %v673, 2
        %v675 = vadd.f32 %v673, %v674
        %v676 = vrot.slane %v675, 1
        %v677 = vadd.f32 %v675, %v676
        %v678 = vadd.f32 %v568, %v570
        %v679 = vrot.slane %v678, 4
        %v680 = vadd.f32 %v678, %v679
        %v681 = vrot.slane %v680, 2
        %v682 = vadd.f32 %v680, %v681
        %v683 = vrot.slane %v682, 1
        %v684 = vadd.f32 %v682, %v683
        %vm701 = vcmask 1041409
        %v702 = vsel %vm701, %v593, %v579
        %vm703 = vcmask 1042434
        %v704 = vsel %vm703, %v607, %v702
        %vm705 = vcmask 1043459
        %v706 = vsel %vm705, %v621, %v704
        %vm707 = vcmask 1044484
        %v708 = vsel %vm707, %v635, %v706
        %vm709 = vcmask 1045509
        %v710 = vsel %vm709, %v649, %v708
        %vm711 = vcmask 1046534
        %v712 = vsel %vm711, %v663, %v710
        %vm713 = vcmask 1047559
        %v714 = vsel %vm713, %v677, %v712
        %v715 = vsel %vm701, %v600, %v586
        %v716 = vsel %vm703, %v614, %v715
        %v717 = vsel %vm705, %v628, %v716
        %v718 = vsel %vm707, %v642, %v717
        %v719 = vsel %vm709, %v656, %v718
        %v720 = vsel %vm711, %v670, %v719
        %v721 = vsel %vm713, %v684, %v720
        %v724 = vadd.f32 %v571, %v714
        %v725 = vadd.f32 %v572, %v721
        %726 = vst [vmem:[#allocation2] sm:$0xff] %v724
        %727 = vst [vmem:[#allocation2 + $0x8] sm:$0xff] %v725
        %p728 = scmp.eq.s32.totalorder %s22, 3
        // Predicated region
        $region78: #{image_embedder_forward.1} parent=68 // pred_check
          %p729 = pneg %p728
        $region79: #{image_embedder_forward.1} parent=68 // pred_check_branch
          %731 = sbr.rel (%p729) target = $region81
        $region80: #{image_embedder_forward.1} parent=68 // pred_region
          %v732 = vld [vmem:[#allocation2] sm:$0xff]
          %v733 = vld [vmem:[#allocation2 + $0x8] sm:$0xff]
          %734 = vst [vmem:[%s287] sm:$0xff] %v732
          %735 = vst [vmem:[%s287 + $0x8] sm:$0xff] %v733
        $region81: #{image_embedder_forward.1} parent=68 // pred_fallthru
          _
        %s736 = sand.u32 %s107, 1
        %s737 = scalar_lea.sflag [#allocation5], %s736
        %s738 = sand.u32 %s107, 1
        %s739 = smul.addr %s738, 16
        %s740 = scalar_lea.vmem [#allocation4], %s739
        // Predicated region
        $region82: #{image_embedder_forward.1} parent=68 // pred_check
          %p741 = pneg %p117
        $region83: #{image_embedder_forward.1} parent=68 // pred_check_branch
          %743 = sbr.rel (%p741) target = $region85
        $region84: #{image_embedder_forward.1} parent=68 // pred_region
          %s745 = ssub.s32 256, 256
          %746 = vsyncadd %s737, %s745
          %s747 = smul.addr %s21, 2
          %s748 = smul.addr %s747, 128
          %s749 = scalar_lea.hbm %s3, %s748
          %s751 = sshll.u32 %s740, 4
          %s752 = int_to_ptr.vmem [resolvable:$true] %s751
          %754 = dma.vmem_to_hbm [thread:$0]  %s752, 256, %s749, %s737
        $region85: #{image_embedder_forward.1} parent=68 // pred_fallthru
          _
      $region69: #{image_embedder_forward.1} parent=5 // pred_fallthru
        _
      %p755 = scmp.le.s32.totalorder 2, %s12
      // Predicated region
      $region86: #{image_embedder_forward.1} parent=5 // pred_check
        %p756 = pneg %p755
      $region87: #{image_embedder_forward.1} parent=5 // pred_check_branch
        %758 = sbr.rel (%p756) target = $region89
      $region88: #{image_embedder_forward.1} parent=5 // pred_region
        %s759 = ssub.s32 %s12, 2
        // Predicated region
        $region90: #{image_embedder_forward.1} parent=88 // pred_check
          %p760 = pneg %p123
        $region91: #{image_embedder_forward.1} parent=88 // pred_check_branch
          %762 = sbr.rel (%p760) target = $region93
        $region92: #{image_embedder_forward.1} parent=88 // pred_region
          %s763 = sand.u32 %s108, 1
          %s764 = scalar_lea.sflag [#allocation5], %s763
          %s765 = sand.u32 %s108, 1
          %s766 = smul.addr %s765, 16
          %s767 = scalar_lea.vmem [#allocation4], %s766
          %768 = dma.done %s764, 256
        $region93: #{image_embedder_forward.1} parent=88 // pred_fallthru
          _
      $region89: #{image_embedder_forward.1} parent=5 // pred_fallthru
        _
    $region6: #{image_embedder_forward.1} parent=1 // loop_footer
      %s16 = sadd.s32 1, %s12
    $region7: #{image_embedder_forward.1} parent=1 // loop_footer_branch
      %11 = sbr.rel target = $region3
    $region8: #{image_embedder_forward.1} parent=1 // loop_exit
      _
    %769 = vsyncpa [#allocation5], 1
    %s770 = scalar_lea.sflag [#allocation5], 1
    %771 = vsyncpa %s770, 1

</llo_original>
